<compile_context>
chip_gen: v7x
topology: tpu7x:2x2x1
jax: 0.10.0
libtpu: 0.0.40
codegen_flags: <defaults>
</compile_context>

<pallas_src>
import functools

import jax
import jax.numpy as jnp
from jax.experimental import pallas as pl
from jax.experimental.pallas import tpu as pltpu

_MAX_BATCH_TILE = 512   # rows per grid step (multiple of 8)


def _round_up(x, m):
    return (x + m - 1) // m * m


def _pick_batch_tile(batch, max_tile):
    """Pick a batch tile: multiple of 8, <= max_tile, >=2 grid steps when the
    batch is big enough, preferring a tile that divides the rounded batch."""
    max_tile = max(8, (max_tile // 8) * 8)
    b8 = _round_up(batch, 8)
    if b8 <= 16:
        return b8                         # tiny batch: single grid step
    min_steps = 4 if b8 >= 1024 else 2    # >=2 keeps both v7x TensorCores busy
    tb = min(max_tile, _round_up(pl.cdiv(b8, min_steps), 8))
    if b8 % tb == 0:
        return tb
    # Look for a reasonably large divisor of b8 so no batch padding is needed.
    for cand in range(tb - 8, 63, -8):
        if b8 % cand == 0:
            return cand
    return tb


def critic_kernel(x_ref, w1_ref, b1_ref, w2_ref, b2_ref, w3_ref, b3_ref, q_ref):
    """One batch tile: fc1 + ReLU, fc2 + ReLU, q head as a lane reduction."""
    bf16 = jnp.bfloat16
    f32 = jnp.float32

    # fc1 + ReLU (single matmul over the packed input, f32 accumulation).
    h1 = jnp.dot(x_ref[...].astype(bf16), w1_ref[...], preferred_element_type=f32)
    h1 = jnp.maximum(h1 + b1_ref[...], 0.0)

    # fc2 + ReLU
    h2 = jnp.dot(h1.astype(bf16), w2_ref[...], preferred_element_type=f32)
    h2 = jnp.maximum(h2 + b2_ref[...], 0.0)

    # q head: VPU broadcast-multiply + lane reduction -> (tb, 1), all in f32.
    q = jnp.sum(h2 * w3_ref[...], axis=-1, keepdims=True) + b3_ref[...]
    q_ref[...] = q.astype(q_ref.dtype)


def prepare_critic_params(params):
    """Cast hidden-layer weights to bf16; keep biases and the q head in f32.

    The q-head weight is reshaped to a (1, fc2) row for the in-kernel VPU
    multiply + lane reduction.  Run once per parameter update.
    """
    w1, b1, w2, b2, w3, b3 = params
    bf16, f32 = jnp.bfloat16, jnp.float32
    return (w1.astype(bf16), b1.astype(f32),
            w2.astype(bf16), b2.astype(f32),
            w3.astype(f32).T,                 # (fc2, 1) -> (1, fc2)
            b3.astype(f32).reshape(1, 1))


@functools.partial(jax.jit, static_argnames=("batch_tile",))
def critic_forward(state, action, others_states, others_actions, kparams,
                   batch_tile=_MAX_BATCH_TILE):
    """q = Linear(relu(Linear(relu(Linear(cat(state, action, others...)))))) -> (B, 1)."""
    w1, b1, w2, b2, w3_row, b3 = kparams

    # One packed input (B, D_in); under jit this concat fuses with producers.
    x = jnp.concatenate([state, action, others_states, others_actions], axis=1)
    B, d_in = x.shape

    tb = _pick_batch_tile(B, batch_tile)
    b_pad = _round_up(B, tb)
    if b_pad != B:
        # Only the single packed (B, D_in) array is padded (not four inputs).
        x = jnp.pad(x, ((0, b_pad - B), (0, 0)))

    grid = (b_pad // tb,)

    def resident(arr):
        # Whole-array block, constant index_map: DMA'd once, VMEM-resident.
        return pl.BlockSpec(arr.shape, lambda i: (0, 0))

    q_pad = pl.pallas_call(
        critic_kernel,
        out_shape=jax.ShapeDtypeStruct((b_pad, 1), jnp.float32),
        grid=grid,
        in_specs=[
            pl.BlockSpec((tb, d_in), lambda i: (i, 0)),   # batch-tiled input
            resident(w1), resident(b1),
            resident(w2), resident(b2),
            resident(w3_row), resident(b3),
        ],
        out_specs=pl.BlockSpec((tb, 1), lambda i: (i, 0)),
        compiler_params=pltpu.CompilerParams(
            dimension_semantics=("parallel",),   # shard batch grid over v7x's 2 TCs
        ),
    )(x, w1, b1, w2, b2, w3_row, b3)

    # Drop batch padding (padded rows hold bias/ReLU garbage, never reduced).
    return q_pad[:B]


def init_critic_params(key, shape_of_input, fc1_dims, fc2_dims):
    """Deterministic PyTorch-nn.Linear-style init; weights stored (in, out), f32."""
    def linear(k, fan_in, fan_out):
        kw, kb = jax.random.split(k)
        bound = 1.0 / jnp.sqrt(jnp.float32(fan_in))
        w = jax.random.uniform(kw, (fan_in, fan_out), jnp.float32, -bound, bound)
        b = jax.random.uniform(kb, (1, fan_out), jnp.float32, -bound, bound)
        return w, b

    k1, k2, k3 = jax.random.split(key, 3)
    w1, b1 = linear(k1, shape_of_input, fc1_dims)
    w2, b2 = linear(k2, fc1_dims, fc2_dims)
    w3, b3 = linear(k3, fc2_dims, 1)
    return (w1, b1, w2, b2, w3, b3)


if __name__ == "__main__":
    # Shapes consistent with the module's forward:
    #   n_agents=2, input_dims=8, n_actions=4
    #   shape_of_input = n_agents * (input_dims + n_actions) = 24
    B = 64
    input_dims, n_actions, n_agents = 8, 4, 2
    fc1_dims, fc2_dims = 64, 64
    shape_of_input = n_agents * (input_dims + n_actions)

    key = jax.random.PRNGKey(0)
    k_s, k_a, k_os, k_oa, k_p = jax.random.split(key, 5)

    state = jax.random.normal(k_s, (B, input_dims), jnp.float32)
    action = jax.random.normal(k_a, (B, n_actions), jnp.float32)
    others_states = jax.random.normal(k_os, (B, (n_agents - 1) * input_dims), jnp.float32)
    others_actions = jax.random.normal(k_oa, (B, (n_agents - 1) * n_actions), jnp.float32)

    raw_params = init_critic_params(k_p, shape_of_input, fc1_dims, fc2_dims)
    kparams = prepare_critic_params(raw_params)

    q = critic_forward(state, action, others_states, others_actions, kparams)
    q = jax.block_until_ready(q)
    assert q.shape == (B, 1), q.shape

    # Reference 1: same math with the same bf16 operand quantization (tight check).
    w1, b1, w2, b2, w3, b3 = raw_params
    bf = lambda t: t.astype(jnp.bfloat16)
    x = jnp.concatenate([state, action, others_states, others_actions], axis=1)
    h1 = jnp.maximum(jnp.dot(bf(x), bf(w1), preferred_element_type=jnp.float32) + b1, 0.0)
    h2 = jnp.maximum(jnp.dot(bf(h1), bf(w2), preferred_element_type=jnp.float32) + b2, 0.0)
    ref = jnp.sum(h2 * w3[:, 0][None, :], axis=-1, keepdims=True) + b3
    assert jnp.allclose(q, ref, atol=2e-2, rtol=2e-2), float(jnp.max(jnp.abs(q - ref)))

    # Reference 2: pure f32 forward (loose check; bf16 operand quantization only).
    ref32 = jnp.maximum(x @ w1 + b1, 0.0)
    ref32 = jnp.maximum(ref32 @ w2 + b2, 0.0)
    ref32 = ref32 @ w3 + b3
    assert jnp.allclose(q, ref32, atol=5e-2, rtol=5e-2), float(jnp.max(jnp.abs(q - ref32)))

    print("KERNEL_OK")
</pallas_src>

<mosaic_0001>
module attributes {stable_mosaic.version = 11 : i64} {
  func.func @critic_kernel(%arg0: i32, %arg1: memref<32x24xf32, #tpu.memory_space<vmem>>, %arg2: memref<24x64xbf16, #tpu.memory_space<vmem>>, %arg3: memref<1x64xf32, #tpu.memory_space<vmem>>, %arg4: memref<64x64xbf16, #tpu.memory_space<vmem>>, %arg5: memref<1x64xf32, #tpu.memory_space<vmem>>, %arg6: memref<1x64xf32, #tpu.memory_space<vmem>>, %arg7: memref<1x1xf32, #tpu.memory_space<vmem>>, %arg8: memref<32x1xf32, #tpu.memory_space<vmem>>) attributes {dimension_semantics = [#tpu.dimension_semantics<parallel>], iteration_bounds = array<i64: 2>, scalar_prefetch = 0 : i64, scratch_operands = 0 : i64, tpu.core_type = #tpu.core_type<tc>, window_params = [{transform_indices = @transform_0, window_bounds = array<i64: 32, 24>}, {pipeline_mode = #tpu.pipeline_mode<synchronous>, transform_indices = @transform_1, window_bounds = array<i64: 24, 64>}, {pipeline_mode = #tpu.pipeline_mode<synchronous>, transform_indices = @transform_2, window_bounds = array<i64: 1, 64>}, {pipeline_mode = #tpu.pipeline_mode<synchronous>, transform_indices = @transform_3, window_bounds = array<i64: 64, 64>}, {pipeline_mode = #tpu.pipeline_mode<synchronous>, transform_indices = @transform_4, window_bounds = array<i64: 1, 64>}, {pipeline_mode = #tpu.pipeline_mode<synchronous>, transform_indices = @transform_5, window_bounds = array<i64: 1, 64>}, {pipeline_mode = #tpu.pipeline_mode<synchronous>, transform_indices = @transform_6, window_bounds = array<i64: 1, 1>}, {transform_indices = @transform_7, window_bounds = array<i64: 32, 1>}]} {
    %c0 = arith.constant 0 : index
    %c0_0 = arith.constant 0 : index
    %0 = vector.load %arg1[%c0, %c0_0] : memref<32x24xf32, #tpu.memory_space<vmem>>, vector<32x24xf32>
    %1 = arith.truncf %0 : vector<32x24xf32> to vector<32x24xbf16>
    %c0_1 = arith.constant 0 : index
    %c0_2 = arith.constant 0 : index
    %2 = vector.load %arg2[%c0_1, %c0_2] : memref<24x64xbf16, #tpu.memory_space<vmem>>, vector<24x64xbf16>
    %cst = arith.constant dense<0.000000e+00> : vector<32x64xf32>
    %3 = tpu.matmul %1, %2, %cst {dimension_numbers = #tpu.dot_dimension_numbers<[1], [0], [0], [1], [0, 0, 1, 1], [], []>} : vector<32x24xbf16>, vector<24x64xbf16>, vector<32x64xf32> -> vector<32x64xf32>
    %c0_3 = arith.constant 0 : index
    %c0_4 = arith.constant 0 : index
    %4 = vector.load %arg3[%c0_3, %c0_4] : memref<1x64xf32, #tpu.memory_space<vmem>>, vector<1x64xf32>
    %5 = vector.broadcast %4 : vector<1x64xf32> to vector<32x64xf32>
    %6 = arith.addf %3, %5 : vector<32x64xf32>
    %cst_5 = arith.constant 0.000000e+00 : f32
    %7 = vector.broadcast %cst_5 : f32 to vector<32x64xf32>
    %8 = arith.maximumf %6, %7 : vector<32x64xf32>
    %9 = arith.truncf %8 : vector<32x64xf32> to vector<32x64xbf16>
    %c0_6 = arith.constant 0 : index
    %c0_7 = arith.constant 0 : index
    %10 = vector.load %arg4[%c0_6, %c0_7] : memref<64x64xbf16, #tpu.memory_space<vmem>>, vector<64x64xbf16>
    %cst_8 = arith.constant dense<0.000000e+00> : vector<32x64xf32>
    %11 = tpu.matmul %9, %10, %cst_8 {dimension_numbers = #tpu.dot_dimension_numbers<[1], [0], [0], [1], [0, 0, 1, 1], [], []>} : vector<32x64xbf16>, vector<64x64xbf16>, vector<32x64xf32> -> vector<32x64xf32>
    %c0_9 = arith.constant 0 : index
    %c0_10 = arith.constant 0 : index
    %12 = vector.load %arg5[%c0_9, %c0_10] : memref<1x64xf32, #tpu.memory_space<vmem>>, vector<1x64xf32>
    %13 = vector.broadcast %12 : vector<1x64xf32> to vector<32x64xf32>
    %14 = arith.addf %11, %13 : vector<32x64xf32>
    %cst_11 = arith.constant 0.000000e+00 : f32
    %15 = vector.broadcast %cst_11 : f32 to vector<32x64xf32>
    %16 = arith.maximumf %14, %15 : vector<32x64xf32>
    %c0_12 = arith.constant 0 : index
    %c0_13 = arith.constant 0 : index
    %17 = vector.load %arg6[%c0_12, %c0_13] : memref<1x64xf32, #tpu.memory_space<vmem>>, vector<1x64xf32>
    %18 = vector.broadcast %17 : vector<1x64xf32> to vector<32x64xf32>
    %19 = arith.mulf %16, %18 : vector<32x64xf32>
    %cst_14 = arith.constant dense<0.000000e+00> : vector<32xf32>
    %20 = vector.multi_reduction <add>, %19, %cst_14 [1] : vector<32x64xf32> to vector<32xf32>
    %21 = vector.shape_cast %20 : vector<32xf32> to vector<32x1xf32>
    %c0_15 = arith.constant 0 : index
    %c0_16 = arith.constant 0 : index
    %22 = vector.load %arg7[%c0_15, %c0_16] : memref<1x1xf32, #tpu.memory_space<vmem>>, vector<1x1xf32>
    %23 = vector.broadcast %22 : vector<1x1xf32> to vector<32x1xf32>
    %24 = arith.addf %21, %23 : vector<32x1xf32>
    %c0_17 = arith.constant 0 : index
    %c0_18 = arith.constant 0 : index
    %25 = vector.load %arg8[%c0_17, %c0_18] : memref<32x1xf32, #tpu.memory_space<vmem>>, vector<32x1xf32>
    tpu.vector_store %arg8[%c0_17, %c0_18], %24 {strides = array<i32>} : memref<32x1xf32, #tpu.memory_space<vmem>>, vector<32x1xf32>,
    return
  }
  func.func @transform_0(%arg0: i32) -> (i32, i32) {
    %c0_i32 = arith.constant 0 : i32
    %c0_i32_0 = arith.constant 0 : i32
    return %arg0, %c0_i32 : i32, i32
  }
  func.func @transform_1(%arg0: i32) -> (i32, i32) {
    %c0_i32 = arith.constant 0 : i32
    %c0_i32_0 = arith.constant 0 : i32
    %c0_i32_1 = arith.constant 0 : i32
    return %c0_i32, %c0_i32_0 : i32, i32
  }
  func.func @transform_2(%arg0: i32) -> (i32, i32) {
    %c0_i32 = arith.constant 0 : i32
    %c0_i32_0 = arith.constant 0 : i32
    %c0_i32_1 = arith.constant 0 : i32
    return %c0_i32, %c0_i32_0 : i32, i32
  }
  func.func @transform_3(%arg0: i32) -> (i32, i32) {
    %c0_i32 = arith.constant 0 : i32
    %c0_i32_0 = arith.constant 0 : i32
    %c0_i32_1 = arith.constant 0 : i32
    return %c0_i32, %c0_i32_0 : i32, i32
  }
  func.func @transform_4(%arg0: i32) -> (i32, i32) {
    %c0_i32 = arith.constant 0 : i32
    %c0_i32_0 = arith.constant 0 : i32
    %c0_i32_1 = arith.constant 0 : i32
    return %c0_i32, %c0_i32_0 : i32, i32
  }
  func.func @transform_5(%arg0: i32) -> (i32, i32) {
    %c0_i32 = arith.constant 0 : i32
    %c0_i32_0 = arith.constant 0 : i32
    %c0_i32_1 = arith.constant 0 : i32
    return %c0_i32, %c0_i32_0 : i32, i32
  }
  func.func @transform_6(%arg0: i32) -> (i32, i32) {
    %c0_i32 = arith.constant 0 : i32
    %c0_i32_0 = arith.constant 0 : i32
    %c0_i32_1 = arith.constant 0 : i32
    return %c0_i32, %c0_i32_0 : i32, i32
  }
  func.func @transform_7(%arg0: i32) -> (i32, i32) {
    %c0_i32 = arith.constant 0 : i32
    %c0_i32_0 = arith.constant 0 : i32
    return %arg0, %c0_i32 : i32, i32
  }
}

</mosaic_0001>

<llo_original>
// kernel: critic_forward.1
$region0: #{critic_forward.1}
  #allocation0 [shape = 'u32[]', space=smem, size = 0x4, offset = 0x4, fixed_abs, tag = 'smem constant byte address 0x4 - core index']
  #allocation1 [shape = 'u32[144,128]{1,0:T(1,128)}', space=vmem, size = 0x12000, scoped, tag = 'internal scratch']
  #allocation2 [shape = 'f32[1,1]{1,0:T(1,128)S(1)}', space=vmem, size = 0x200, scoped, tag = 'scoped memory for critic_forward.1']
  %s0 = inlined_call_operand.vmem [shape: f32[64,24], index: 0, kind: input, shape index: {}]
  %s1 = inlined_call_operand.vmem [shape: bf16[24,64], index: 1, kind: input, shape index: {}]
  %s2 = inlined_call_operand.vmem [shape: f32[1,64], index: 2, kind: input, shape index: {}]
  %s3 = inlined_call_operand.vmem [shape: bf16[64,64], index: 3, kind: input, shape index: {}]
  %s4 = inlined_call_operand.vmem [shape: f32[1,64], index: 4, kind: input, shape index: {}]
  %s5 = inlined_call_operand.vmem [shape: f32[1,64], index: 5, kind: input, shape index: {}]
  %s6 = inlined_call_operand.<no memory space> [shape: f32[1,1], index: 6, kind: input, shape index: {}]
  %s7 = inlined_call_operand.vmem [shape: f32[64,1], index: 7, kind: output, shape index: {}]
  %s8 = sld [smem:[#allocation0]]
  $region61: #{critic_forward.1} parent=0
    _
  %s10 = ssub.s32 1, %s8
  %s11 = scalar_select 0, %s10, %s8
  %v12 = vstv %s6
  %13 = vst [vmem:[#allocation2] sm:$0x1] %v12
  loop: start=0, step=1, limit=4
  $region2: #{critic_forward.1} parent=0 // loop_pre_header
    _
  $region3: #{critic_forward.1} parent=0 // loop_header
    %s15 = sphi 0, %s19
    %p16 = scmp.ge.s32.totalorder %s15, 4
    %s25 = sphi 0, %s27
    %s28 = sphi 0, %s25
    %s29 = sphi 0, %s28
    %s45 = sphi 0, %s29
    %s49 = sphi 0, %s49
    %s51 = sphi 0, %s49
    %s52 = sphi 0, %s51
    %s66 = sphi 0, %s52
    %s70 = sphi 0, %s70
    %s72 = sphi 0, %s70
    %s73 = sphi 0, %s72
    %s87 = sphi 0, %s73
    %s91 = sphi 0, %s91
    %s93 = sphi 0, %s91
    %s94 = sphi 0, %s93
    %s108 = sphi 0, %s94
    %s112 = sphi 0, %s112
    %s114 = sphi 0, %s112
    %s115 = sphi 0, %s114
    %s129 = sphi 0, %s115
    %s133 = sphi 0, %s133
    %s135 = sphi 0, %s133
    %s136 = sphi 0, %s135
    %s150 = sphi 0, %s136
    %s154 = sphi 0, %s154
    %s156 = sphi 0, %s154
    %s157 = sphi 0, %s156
    %s171 = sphi 0, %s157
    %s177 = sphi 0, %s179
    %s180 = sphi 0, %s177
    %s181 = sphi 0, %s180
    %s197 = sphi 0, %s181
  $region4: #{critic_forward.1} parent=0 // loop_header_branch
    %18 = sbr.rel (%p16) target = $region8
  $region5: #{critic_forward.1} parent=0 // loop_body
    %s20 = ssub.s32 %s15, 1
    %s21 = ssub.s32 %s15, 2
    %s22 = sadd.s32 %s15, 1
    %s23 = ssub.s32 %s15, %s22
    %p24 = scmp.eq.s32.totalorder %s23, 0
    %s26 = sadd.s32 %s25, 1
    %s27 = scalar_select %p24, %s25, %s26
    %p30 = pneg %p24
    %p31 = scmp.eq.s32.totalorder %s15, 1
    %p32 = por %p30, %p31
    %p33 = scmp.ne.s32.totalorder %s25, %s28
    %p34 = scmp.eq.s32.totalorder %s15, 0
    %p35 = por %p33, %p34
    %p36 = scmp.ne.s32.totalorder %s25, %s28
    %p37 = scmp.eq.s32.totalorder %s20, 1
    %p38 = por %p36, %p37
    %p39 = scmp.ne.s32.totalorder %s28, %s29
    %p40 = scmp.eq.s32.totalorder %s20, 0
    %p41 = por %p39, %p40
    %p42 = scmp.ne.s32.totalorder %s28, %s29
    %p43 = scmp.eq.s32.totalorder %s21, 1
    %p44 = por %p42, %p43
    %p46 = scmp.ne.s32.totalorder %s29, %s45
    %p47 = scmp.eq.s32.totalorder %s21, 0
    %p48 = por %p46, %p47
    %s50 = sadd.s32 %s49, 1
    %p53 = scmp.eq.s32.totalorder %s15, 1
    %p54 = scmp.ne.s32.totalorder %s49, %s51
    %p55 = scmp.eq.s32.totalorder %s15, 0
    %p56 = por %p54, %p55
    %p57 = scmp.ne.s32.totalorder %s49, %s51
    %p58 = scmp.eq.s32.totalorder %s20, 1
    %p59 = por %p57, %p58
    %p60 = scmp.ne.s32.totalorder %s51, %s52
    %p61 = scmp.eq.s32.totalorder %s20, 0
    %p62 = por %p60, %p61
    %p63 = scmp.ne.s32.totalorder %s51, %s52
    %p64 = scmp.eq.s32.totalorder %s21, 1
    %p65 = por %p63, %p64
    %p67 = scmp.ne.s32.totalorder %s52, %s66
    %p68 = scmp.eq.s32.totalorder %s21, 0
    %p69 = por %p67, %p68
    %s71 = sadd.s32 %s70, 1
    %p74 = scmp.eq.s32.totalorder %s15, 1
    %p75 = scmp.ne.s32.totalorder %s70, %s72
    %p76 = scmp.eq.s32.totalorder %s15, 0
    %p77 = por %p75, %p76
    %p78 = scmp.ne.s32.totalorder %s70, %s72
    %p79 = scmp.eq.s32.totalorder %s20, 1
    %p80 = por %p78, %p79
    %p81 = scmp.ne.s32.totalorder %s72, %s73
    %p82 = scmp.eq.s32.totalorder %s20, 0
    %p83 = por %p81, %p82
    %p84 = scmp.ne.s32.totalorder %s72, %s73
    %p85 = scmp.eq.s32.totalorder %s21, 1
    %p86 = por %p84, %p85
    %p88 = scmp.ne.s32.totalorder %s73, %s87
    %p89 = scmp.eq.s32.totalorder %s21, 0
    %p90 = por %p88, %p89
    %s92 = sadd.s32 %s91, 1
    %p95 = scmp.eq.s32.totalorder %s15, 1
    %p96 = scmp.ne.s32.totalorder %s91, %s93
    %p97 = scmp.eq.s32.totalorder %s15, 0
    %p98 = por %p96, %p97
    %p99 = scmp.ne.s32.totalorder %s91, %s93
    %p100 = scmp.eq.s32.totalorder %s20, 1
    %p101 = por %p99, %p100
    %p102 = scmp.ne.s32.totalorder %s93, %s94
    %p103 = scmp.eq.s32.totalorder %s20, 0
    %p104 = por %p102, %p103
    %p105 = scmp.ne.s32.totalorder %s93, %s94
    %p106 = scmp.eq.s32.totalorder %s21, 1
    %p107 = por %p105, %p106
    %p109 = scmp.ne.s32.totalorder %s94, %s108
    %p110 = scmp.eq.s32.totalorder %s21, 0
    %p111 = por %p109, %p110
    %s113 = sadd.s32 %s112, 1
    %p116 = scmp.eq.s32.totalorder %s15, 1
    %p117 = scmp.ne.s32.totalorder %s112, %s114
    %p118 = scmp.eq.s32.totalorder %s15, 0
    %p119 = por %p117, %p118
    %p120 = scmp.ne.s32.totalorder %s112, %s114
    %p121 = scmp.eq.s32.totalorder %s20, 1
    %p122 = por %p120, %p121
    %p123 = scmp.ne.s32.totalorder %s114, %s115
    %p124 = scmp.eq.s32.totalorder %s20, 0
    %p125 = por %p123, %p124
    %p126 = scmp.ne.s32.totalorder %s114, %s115
    %p127 = scmp.eq.s32.totalorder %s21, 1
    %p128 = por %p126, %p127
    %p130 = scmp.ne.s32.totalorder %s115, %s129
    %p131 = scmp.eq.s32.totalorder %s21, 0
    %p132 = por %p130, %p131
    %s134 = sadd.s32 %s133, 1
    %p137 = scmp.eq.s32.totalorder %s15, 1
    %p138 = scmp.ne.s32.totalorder %s133, %s135
    %p139 = scmp.eq.s32.totalorder %s15, 0
    %p140 = por %p138, %p139
    %p141 = scmp.ne.s32.totalorder %s133, %s135
    %p142 = scmp.eq.s32.totalorder %s20, 1
    %p143 = por %p141, %p142
    %p144 = scmp.ne.s32.totalorder %s135, %s136
    %p145 = scmp.eq.s32.totalorder %s20, 0
    %p146 = por %p144, %p145
    %p147 = scmp.ne.s32.totalorder %s135, %s136
    %p148 = scmp.eq.s32.totalorder %s21, 1
    %p149 = por %p147, %p148
    %p151 = scmp.ne.s32.totalorder %s136, %s150
    %p152 = scmp.eq.s32.totalorder %s21, 0
    %p153 = por %p151, %p152
    %s155 = sadd.s32 %s154, 1
    %p158 = scmp.eq.s32.totalorder %s15, 1
    %p159 = scmp.ne.s32.totalorder %s154, %s156
    %p160 = scmp.eq.s32.totalorder %s15, 0
    %p161 = por %p159, %p160
    %p162 = scmp.ne.s32.totalorder %s154, %s156
    %p163 = scmp.eq.s32.totalorder %s20, 1
    %p164 = por %p162, %p163
    %p165 = scmp.ne.s32.totalorder %s156, %s157
    %p166 = scmp.eq.s32.totalorder %s20, 0
    %p167 = por %p165, %p166
    %p168 = scmp.ne.s32.totalorder %s156, %s157
    %p169 = scmp.eq.s32.totalorder %s21, 1
    %p170 = por %p168, %p169
    %p172 = scmp.ne.s32.totalorder %s157, %s171
    %p173 = scmp.eq.s32.totalorder %s21, 0
    %p174 = por %p172, %p173
    %s175 = ssub.s32 %s15, %s22
    %p176 = scmp.eq.s32.totalorder %s175, 0
    %s178 = sadd.s32 %s177, 1
    %s179 = scalar_select %p176, %s177, %s178
    %p182 = pneg %p176
    %p183 = scmp.eq.s32.totalorder %s15, 1
    %p184 = por %p182, %p183
    %p185 = scmp.ne.s32.totalorder %s177, %s180
    %p186 = scmp.eq.s32.totalorder %s15, 0
    %p187 = por %p185, %p186
    %p188 = scmp.ne.s32.totalorder %s177, %s180
    %p189 = scmp.eq.s32.totalorder %s20, 1
    %p190 = por %p188, %p189
    %p191 = scmp.ne.s32.totalorder %s180, %s181
    %p192 = scmp.eq.s32.totalorder %s20, 0
    %p193 = por %p191, %p192
    %p194 = scmp.ne.s32.totalorder %s180, %s181
    %p195 = scmp.eq.s32.totalorder %s21, 1
    %p196 = por %p194, %p195
    %p198 = scmp.ne.s32.totalorder %s181, %s197
    %p199 = scmp.eq.s32.totalorder %s21, 0
    %p200 = por %p198, %p199
    %p201 = scmp.le.s32.totalorder 1, %s15
    %p202 = scmp.lt.s32.totalorder %s15, 3
    %p203 = pnand %p201, %p202
    %p204 = pneg %p203
    // Predicated region
    $region9: #{critic_forward.1} parent=5 // pred_check
      _
    $region10: #{critic_forward.1} parent=5 // pred_check_branch
      %206 = sbr.rel (%p203) target = $region12
    $region11: #{critic_forward.1} parent=5 // pred_region
      %s207 = ssub.s32 %s15, 1
      // Predicated region
      $region13: #{critic_forward.1} parent=11 // pred_check
        %p208 = pneg %p62
      $region14: #{critic_forward.1} parent=11 // pred_check_branch
        %210 = sbr.rel (%p208) target = $region16
      $region15: #{critic_forward.1} parent=11 // pred_region
        _
      $region16: #{critic_forward.1} parent=11 // pred_fallthru
        _
      // Predicated region
      $region17: #{critic_forward.1} parent=11 // pred_check
        %p211 = pneg %p83
      $region18: #{critic_forward.1} parent=11 // pred_check_branch
        %213 = sbr.rel (%p211) target = $region20
      $region19: #{critic_forward.1} parent=11 // pred_region
        _
      $region20: #{critic_forward.1} parent=11 // pred_fallthru
        _
      // Predicated region
      $region21: #{critic_forward.1} parent=11 // pred_check
        %p214 = pneg %p104
      $region22: #{critic_forward.1} parent=11 // pred_check_branch
        %216 = sbr.rel (%p214) target = $region24
      $region23: #{critic_forward.1} parent=11 // pred_region
        _
      $region24: #{critic_forward.1} parent=11 // pred_fallthru
        _
      // Predicated region
      $region25: #{critic_forward.1} parent=11 // pred_check
        %p217 = pneg %p125
      $region26: #{critic_forward.1} parent=11 // pred_check_branch
        %219 = sbr.rel (%p217) target = $region28
      $region27: #{critic_forward.1} parent=11 // pred_region
        _
      $region28: #{critic_forward.1} parent=11 // pred_fallthru
        _
      // Predicated region
      $region29: #{critic_forward.1} parent=11 // pred_check
        %p220 = pneg %p146
      $region30: #{critic_forward.1} parent=11 // pred_check_branch
        %222 = sbr.rel (%p220) target = $region32
      $region31: #{critic_forward.1} parent=11 // pred_region
        _
      $region32: #{critic_forward.1} parent=11 // pred_fallthru
        _
      // Predicated region
      $region33: #{critic_forward.1} parent=11 // pred_check
        %p223 = pneg %p167
      $region34: #{critic_forward.1} parent=11 // pred_check_branch
        %225 = sbr.rel (%p223) target = $region36
      $region35: #{critic_forward.1} parent=11 // pred_region
        _
      $region36: #{critic_forward.1} parent=11 // pred_fallthru
        _
    $region12: #{critic_forward.1} parent=5 // pred_fallthru
      _
    %p226 = scmp.lt.s32.totalorder %s15, 2
    // Predicated region
    $region37: #{critic_forward.1} parent=5 // pred_check
      %p227 = pneg %p226
    $region38: #{critic_forward.1} parent=5 // pred_check_branch
      %229 = sbr.rel (%p227) target = $region40
    $region39: #{critic_forward.1} parent=5 // pred_region
      // Predicated region
      $region41: #{critic_forward.1} parent=39 // pred_check
        %p230 = pneg %p35
      $region42: #{critic_forward.1} parent=39 // pred_check_branch
        %232 = sbr.rel (%p230) target = $region44
      $region43: #{critic_forward.1} parent=39 // pred_region
        %s233 = smul.u32 4, %s15
        %p234 = scmp.lt.s32.totalorder %s233, 7
        %s235 = scalar_select %p234, %s233, 7
        %s236 = smul.addr %s235, 8
        %s237 = scalar_lea.vmem %s0, %s236
        %s238 = smul.u32 4, %s15
      $region44: #{critic_forward.1} parent=39 // pred_fallthru
        _
    $region40: #{critic_forward.1} parent=5 // pred_fallthru
      _
    %p239 = scmp.le.s32.totalorder 1, %s15
    %p240 = scmp.lt.s32.totalorder %s15, 3
    %p241 = pnand %p239, %p240
    %p242 = pneg %p241
    // Predicated region
    $region45: #{critic_forward.1} parent=5 // pred_check
      _
    $region46: #{critic_forward.1} parent=5 // pred_check_branch
      %244 = sbr.rel (%p241) target = $region48
    $region47: #{critic_forward.1} parent=5 // pred_region
      %s245 = ssub.s32 %s15, 1
      %s246 = smul.u32 4, %s20
      %p247 = scmp.lt.s32.totalorder %s246, 7
      %s248 = scalar_select %p247, %s246, 7
      %s249 = smul.addr %s248, 8
      %s250 = scalar_lea.vmem %s0, %s249
      %p251 = pneg %p41
      %p252 = pneg %p38
      %p253 = pneg %p62
      %p254 = pneg %p59
      %p255 = pneg %p83
      %p256 = pneg %p80
      %p257 = pneg %p104
      %p258 = pneg %p101
      %p259 = pneg %p125
      %p260 = pneg %p122
      %p261 = pneg %p146
      %p262 = pneg %p143
      %p263 = pneg %p167
      %p264 = pneg %p164
      %p265 = pneg %p193
      %p266 = pneg %p190
      %s267 = smul.u32 4, %s20
      %p268 = scmp.lt.s32.totalorder %s267, 7
      %s269 = scalar_select %p268, %s267, 7
      %s270 = smul.addr %s269, 8
      %s271 = scalar_lea.vmem %s7, %s270
      %s272 = smul.u32 4, %s20
      %p273 = scmp.lt.s32.totalorder %s272, 7
      %s274 = scalar_select %p273, %s272, 7
      %s275 = smul.addr %s274, 8
      %s276 = scalar_lea.vmem %s0, %s275
      %s277 = smul.u32 4, %s20
      %s278 = smul.u32 4, %s20
      %p279 = scmp.lt.s32.totalorder %s278, 7
      %s280 = scalar_select %p279, %s278, 7
      %s281 = smul.addr %s280, 8
      %s282 = scalar_lea.vmem %s7, %s281
      %s283 = smul.u32 4, %s20
      %v285 = vld [vmem:[%s276] sm:$0xff]
      %v286 = vld [vmem:[%s276 + $0x8] sm:$0xff]
      %v287 = vld [vmem:[%s276 + $0x10] sm:$0xff]
      %v288 = vld [vmem:[%s276 + $0x18] sm:$0xff]
      %v289 = vpack.c.bf16 %v286, %v285
      %v290 = vpack.c.bf16 %v288, %v287
      %v291 = vld [vmem:[%s1] sm:$0xf]
      %v292 = vld [vmem:[%s1 + $0x4] sm:$0xf]
      %v293 = vld [vmem:[%s1 + $0x8] sm:$0xf]
      %v294 = vld [vmem:[%s2] sm:$0x1]
      %v296 = vlaneseq
      %v297 = vshrl.u32 %v296, 7
      %v298 = vsub.s32 0, %v297
      %v299 = vrot.slane %v294, %v298
      %v304 = vunpack.c.l.b16 %v291
      %v305 = vunpack.c.l.b16 %v292
      %v306 = vunpack.c.l.b16 %v293
      %v307 = vpack.c.b16 %v305, %v304
      %v308 = vpack.c.b16 %v306, %v306
      %vm310 = vcmask 195584
      %v312 = vsel %vm310, %v289, 0
      %v315 = vsel %vm310, %v290, 0
      %vm317 = vcmask 1043456
      %v319 = vsel %vm317, %v308, 0
      %321 = vmatprep.subr.bf16.mxu0 0
      %322 = vmatpush1.bf16.msra.mxu0 %v307
      %323 = vmatprep.subr.bf16.mxu0 0
      %324 = vmatpush1.bf16.msra.mxu0 %v319
      %325 = vmatprep.subr.bf16.mxu0 0
      %326 = vmatpush1.bf16.msra.mxu0 0
      %327 = vmatprep.subr.bf16.mxu0 0
      %328 = vmatpush1.bf16.msra.mxu0 0
      %329 = vmatprep.subr.bf16.mxu0 0
      %330 = vmatpush1.bf16.msra.mxu0 0
      %331 = vmatprep.subr.bf16.mxu0 0
      %332 = vmatpush1.bf16.msra.mxu0 0
      %333 = vmatprep.subr.bf16.mxu0 0
      %334 = vmatpush1.bf16.msra.mxu0 0
      %335 = vmatprep.subr.bf16.mxu0 0
      %336 = vmatpush1.bf16.msra.mxu0 0
      %337 = vmatprep.subr.bf16.mxu0 0
      %338 = vmatpush1.bf16.msra.mxu0 0
      %339 = vmatprep.subr.bf16.mxu0 0
      %340 = vmatpush1.bf16.msra.mxu0 0
      %341 = vmatprep.subr.bf16.mxu0 0
      %342 = vmatpush1.bf16.msra.mxu0 0
      %343 = vmatprep.subr.bf16.mxu0 0
      %344 = vmatpush1.bf16.msra.mxu0 0
      %345 = vmatprep.subr.bf16.mxu0 0
      %346 = vmatpush1.bf16.msra.mxu0 0
      %347 = vmatprep.subr.bf16.mxu0 0
      %348 = vmatpush1.bf16.msra.mxu0 0
      %349 = vmatprep.subr.bf16.mxu0 0
      %350 = vmatpush1.bf16.msra.mxu0 0
      %351 = vmatprep.subr.bf16.mxu0 0
      %352 = vmatpush1.bf16.msra.mxu0 0
      %353 = vmatprep.mubr.bf16.mxu0 0
      %354 = vmatmul.mubr.bf16.gmra.mrb[0].mxu0 %v312
      %v355 = vpop.f32.mrb[0].mxu0
      %v356 = vadd.f32 %v299, %v355
      %v357 = vpop.f32.mrb[0].mxu0
      %v358 = vpop.f32.mrb[0].mxu0
      %v359 = vadd.f32 %v299, %v358
      %v360 = vpop.f32.mrb[0].mxu0
      %361 = vmatprep.mubr.bf16.mxu0 0
      %362 = vmatmul.mubr.bf16.gmra.mrb[0].mxu0 %v315
      %v363 = vpop.f32.mrb[0].mxu0
      %v364 = vadd.f32 %v299, %v363
      %v365 = vpop.f32.mrb[0].mxu0
      %v366 = vpop.f32.mrb[0].mxu0
      %v367 = vadd.f32 %v299, %v366
      %v368 = vpop.f32.mrb[0].mxu0
      %369 = vdwg.mxu0
      %v370 = vmax.f32 %v356, 0.0
      %v371 = vmax.f32 %v359, 0.0
      %v372 = vmax.f32 %v364, 0.0
      %v373 = vmax.f32 %v367, 0.0
      %v374 = vpack.c.bf16 %v371, %v370
      %v375 = vpack.c.bf16 %v373, %v372
      %v376 = vld [vmem:[%s3] sm:$0xf]
      %v377 = vld [vmem:[%s3 + $0x4] sm:$0xf]
      %v378 = vld [vmem:[%s3 + $0x8] sm:$0xf]
      %v379 = vld [vmem:[%s3 + $0xc] sm:$0xf]
      %v380 = vld [vmem:[%s3 + $0x10] sm:$0xf]
      %v381 = vld [vmem:[%s3 + $0x14] sm:$0xf]
      %v382 = vld [vmem:[%s3 + $0x18] sm:$0xf]
      %v383 = vld [vmem:[%s3 + $0x1c] sm:$0xf]
      %v384 = vld [vmem:[%s4] sm:$0x1]
      %v386 = vlaneseq
      %v387 = vshrl.u32 %v386, 7
      %v388 = vsub.s32 0, %v387
      %v389 = vrot.slane %v384, %v388
      %v399 = vunpack.c.l.b16 %v376
      %v400 = vunpack.c.l.b16 %v377
      %v401 = vunpack.c.l.b16 %v378
      %v402 = vunpack.c.l.b16 %v379
      %v403 = vunpack.c.l.b16 %v380
      %v404 = vunpack.c.l.b16 %v381
      %v405 = vunpack.c.l.b16 %v382
      %v406 = vunpack.c.l.b16 %v383
      %v407 = vpack.c.b16 %v400, %v399
      %v408 = vpack.c.b16 %v402, %v401
      %v409 = vpack.c.b16 %v404, %v403
      %v410 = vpack.c.b16 %v406, %v405
      %vm415 = vcmask 523264
      %v417 = vsel %vm415, %v374, 0
      %v420 = vsel %vm415, %v375, 0
      %422 = vmatprep.subr.bf16.mxu0 0
      %423 = vmatpush1.bf16.msra.mxu0 %v407
      %424 = vmatprep.subr.bf16.mxu0 0
      %425 = vmatpush1.bf16.msra.mxu0 %v408
      %426 = vmatprep.subr.bf16.mxu0 0
      %427 = vmatpush1.bf16.msra.mxu0 %v409
      %428 = vmatprep.subr.bf16.mxu0 0
      %429 = vmatpush1.bf16.msra.mxu0 %v410
      %430 = vmatprep.subr.bf16.mxu0 0
      %431 = vmatpush1.bf16.msra.mxu0 0
      %432 = vmatprep.subr.bf16.mxu0 0
      %433 = vmatpush1.bf16.msra.mxu0 0
      %434 = vmatprep.subr.bf16.mxu0 0
      %435 = vmatpush1.bf16.msra.mxu0 0
      %436 = vmatprep.subr.bf16.mxu0 0
      %437 = vmatpush1.bf16.msra.mxu0 0
      %438 = vmatprep.subr.bf16.mxu0 0
      %439 = vmatpush1.bf16.msra.mxu0 0
      %440 = vmatprep.subr.bf16.mxu0 0
      %441 = vmatpush1.bf16.msra.mxu0 0
      %442 = vmatprep.subr.bf16.mxu0 0
      %443 = vmatpush1.bf16.msra.mxu0 0
      %444 = vmatprep.subr.bf16.mxu0 0
      %445 = vmatpush1.bf16.msra.mxu0 0
      %446 = vmatprep.subr.bf16.mxu0 0
      %447 = vmatpush1.bf16.msra.mxu0 0
      %448 = vmatprep.subr.bf16.mxu0 0
      %449 = vmatpush1.bf16.msra.mxu0 0
      %450 = vmatprep.subr.bf16.mxu0 0
      %451 = vmatpush1.bf16.msra.mxu0 0
      %452 = vmatprep.subr.bf16.mxu0 0
      %453 = vmatpush1.bf16.msra.mxu0 0
      %454 = vmatprep.mubr.bf16.mxu0 0
      %455 = vmatmul.mubr.bf16.gmra.mrb[0].mxu0 %v417
      %v456 = vpop.f32.mrb[0].mxu0
      %v457 = vadd.f32 %v389, %v456
      %v458 = vpop.f32.mrb[0].mxu0
      %v459 = vpop.f32.mrb[0].mxu0
      %v460 = vadd.f32 %v389, %v459
      %v461 = vpop.f32.mrb[0].mxu0
      %462 = vmatprep.mubr.bf16.mxu0 0
      %463 = vmatmul.mubr.bf16.gmra.mrb[0].mxu0 %v420
      %v464 = vpop.f32.mrb[0].mxu0
      %v465 = vadd.f32 %v389, %v464
      %v466 = vpop.f32.mrb[0].mxu0
      %v467 = vpop.f32.mrb[0].mxu0
      %v468 = vadd.f32 %v389, %v467
      %v469 = vpop.f32.mrb[0].mxu0
      %470 = vdwg.mxu0
      %v471 = vmax.f32 %v457, 0.0
      %v472 = vmax.f32 %v460, 0.0
      %v473 = vmax.f32 %v465, 0.0
      %v474 = vmax.f32 %v468, 0.0
      %v475 = vld [vmem:[%s5] sm:$0x1]
      %v477 = vlaneseq
      %v478 = vshrl.u32 %v477, 7
      %v479 = vsub.s32 0, %v478
      %v480 = vrot.slane %v475, %v479
      %v482 = vmul.f32 %v471, %v480
      %v483 = vmul.f32 %v472, %v480
      %v484 = vmul.f32 %v473, %v480
      %v485 = vmul.f32 %v474, %v480
      %v486 = vsel %vm415, %v482, 0.0
      %487 = vadd.xlane.f32.xlu0 %v486
      %v488 = vpop.xlane.xlu0 %487
      %v489 = vsel %vm415, %v483, 0.0
      %490 = vadd.xlane.f32.xlu0 %v489
      %v491 = vpop.xlane.xlu0 %490
      %v492 = vsel %vm415, %v484, 0.0
      %493 = vadd.xlane.f32.xlu0 %v492
      %v494 = vpop.xlane.xlu0 %493
      %v495 = vsel %vm415, %v485, 0.0
      %496 = vadd.xlane.f32.xlu0 %v495
      %v497 = vpop.xlane.xlu0 %496
      %v498 = vld [vmem:[#allocation2] sm:$0x1]
      %v500 = vlaneseq
      %v501 = vshrl.u32 %v500, 7
      %v502 = vsub.s32 0, %v501
      %v503 = vrot.slane %v498, %v502
      %v505 = vadd.f32 %v488, %v503
      %v506 = vadd.f32 %v491, %v503
      %v507 = vadd.f32 %v494, %v503
      %v508 = vadd.f32 %v497, %v503
      %vm509 = vcmask 7168
      %510 = vst.msk [vmem:[%s282] sm:$0xff] %vm509, %v505
      %511 = vst.msk [vmem:[%s282 + $0x8] sm:$0xff] %vm509, %v506
      %512 = vst.msk [vmem:[%s282 + $0x10] sm:$0xff] %vm509, %v507
      %513 = vst.msk [vmem:[%s282 + $0x18] sm:$0xff] %vm509, %v508
      %s514 = smul.u32 4, %s20
      %p515 = scmp.lt.s32.totalorder %s514, 7
      %s516 = scalar_select %p515, %s514, 7
      %s517 = smul.addr %s516, 8
      %s518 = scalar_lea.vmem %s7, %s517
      // Predicated region
      $region49: #{critic_forward.1} parent=47 // pred_check
        %p519 = pneg %p190
      $region50: #{critic_forward.1} parent=47 // pred_check_branch
        %521 = sbr.rel (%p519) target = $region52
      $region51: #{critic_forward.1} parent=47 // pred_region
        %s522 = smul.u32 4, %s20
      $region52: #{critic_forward.1} parent=47 // pred_fallthru
        _
    $region48: #{critic_forward.1} parent=5 // pred_fallthru
      _
    %p523 = scmp.le.s32.totalorder 2, %s15
    // Predicated region
    $region53: #{critic_forward.1} parent=5 // pred_check
      %p524 = pneg %p523
    $region54: #{critic_forward.1} parent=5 // pred_check_branch
      %526 = sbr.rel (%p524) target = $region56
    $region55: #{critic_forward.1} parent=5 // pred_region
      %s527 = ssub.s32 %s15, 2
      // Predicated region
      $region57: #{critic_forward.1} parent=55 // pred_check
        %p528 = pneg %p196
      $region58: #{critic_forward.1} parent=55 // pred_check_branch
        %530 = sbr.rel (%p528) target = $region60
      $region59: #{critic_forward.1} parent=55 // pred_region
        %s531 = smul.u32 4, %s21
        %p532 = scmp.lt.s32.totalorder %s531, 7
        %s533 = scalar_select %p532, %s531, 7
        %s534 = smul.addr %s533, 8
        %s535 = scalar_lea.vmem %s7, %s534
      $region60: #{critic_forward.1} parent=55 // pred_fallthru
        _
    $region56: #{critic_forward.1} parent=5 // pred_fallthru
      _
  $region6: #{critic_forward.1} parent=0 // loop_footer
    %s19 = sadd.s32 1, %s15
  $region7: #{critic_forward.1} parent=0 // loop_footer_branch
    %14 = sbr.rel target = $region3
  $region8: #{critic_forward.1} parent=0 // loop_exit
    _

</llo_original>
